<compile_context>
chip_gen: v5e
topology: v5e:2x2
jax: 0.10.0
libtpu: 0.0.40
codegen_flags: <defaults>
</compile_context>

<pallas_src>
import math

import jax
import jax.numpy as jnp
from jax.experimental import pallas as pl
from jax.experimental.pallas import tpu as pltpu


def _round_up(x, m):
    return (x + m - 1) // m * m


def _sublane_multiple(dtype):
    # (8, 128) vregs pack sub-32-bit dtypes along sublanes: 8 for 4-byte, 16 for
    # 2-byte, 32 for 1-byte element types.
    itemsize = jnp.dtype(dtype).itemsize
    return max(8, 32 // max(1, itemsize))


def _patch_embed_kernel(x_ref, w_ref, b_ref, o_ref):
    # x_ref: (TILE, f*C), w_ref: (f*C, f*E), b_ref: (1, f*E), o_ref: (TILE, f*E)
    acc = jnp.dot(x_ref[...], w_ref[...], preferred_element_type=jnp.float32)
    o_ref[...] = (acc + b_ref[...].astype(jnp.float32)).astype(o_ref.dtype)


def _pick_tile(Mf, fC, fE, in_bytes, out_bytes, w_bytes, sublane):
    """Folded rows per grid step, from a byte budget.

    Lower target: ~4 MiB of HBM traffic per step (amortize the ~0.35 us/step
    pipeline overhead -- matters most at v7x's ~3.2 TB/s).
    Upper bounds: (a) double-buffered blocks + the f32 matmul intermediate +
    resident weight fit well under the scoped-VMEM limit we request,
    (b) >= ~8 grid steps when the problem is big enough, so DMA-in / compute /
    DMA-out overlap and each v7x TensorCore gets several steps.
    Prefer an exact divisor of Mf so no zero-pad / output-slice HBM pass is needed.
    """
    row_bytes = fC * in_bytes + fE * out_bytes                 # HBM bytes per folded row
    vmem_row = 2 * fC * in_bytes + 2 * fE * out_bytes + fE * 4  # dbl-buffered blocks + f32 acc
    weight_resident = 2 * (fC * fE * w_bytes + fE * w_bytes)    # (double-buffered by Pallas)

    target_bytes = 4 << 20
    block_budget = max(4 << 20, (24 << 20) - weight_resident)

    cap_vmem = max(sublane, (block_budget // max(vmem_row, 1)) // sublane * sublane)
    cap_steps = _round_up(max(1, -(-Mf // 8)), sublane)         # keep >= ~8 steps
    tile_target = _round_up(max(sublane, target_bytes // max(row_bytes, 1)), sublane)

    max_tile = min(cap_vmem, cap_steps, _round_up(Mf, sublane))
    padded_tile = max(sublane, min(tile_target, max_tile))

    # Largest divisor of Mf that is a multiple of the sublane count and <= max_tile.
    best = 0
    if Mf % sublane == 0:
        q = Mf // sublane
        for d in range(1, int(math.isqrt(q)) + 1):
            if q % d == 0:
                for cq in (d, q // d):
                    cand = cq * sublane
                    if cand <= max_tile and cand > best:
                        best = cand
    # Accept the divisor unless it is pathologically small vs. the byte target
    # (in which case padding + a big tile wins).
    if best and best * 4 >= padded_tile:
        return best
    return padded_tile


def patch_embed_2d(x_nchw, weight, bias, *, out_dtype=None, tile_rows=None):
    """Equivalent of PatchEmbed2D.forward with norm_layer=None.

    Args:
      x_nchw: [B, C, H, W] input (PyTorch NCHW convention).
      weight: [E, C] (Conv2d 1x1 weight squeezed from [E, C, 1, 1]).
      bias:   [E] conv bias.
      out_dtype: optional output dtype (e.g. jnp.bfloat16 for a bf16 consumer);
        default keeps the input dtype.  Accumulation is always f32 in-kernel.
      tile_rows: optional manual override of folded rows per grid step.
    Returns:
      [B, H, W, E] output.
    """
    B, C, H, W = x_nchw.shape
    E = weight.shape[0]
    M = B * H * W
    out_dtype = x_nchw.dtype if out_dtype is None else jnp.dtype(out_dtype)

    # Minimal fold factor so the folded embed dim is a multiple of 128 lanes.
    f = 128 // math.gcd(E, 128)
    fC, fE = f * C, f * E

    in_bytes = jnp.dtype(x_nchw.dtype).itemsize
    out_bytes = jnp.dtype(out_dtype).itemsize
    w_bytes = jnp.dtype(weight.dtype).itemsize
    # The tile is the second-to-last dim of both the input and output blocks:
    # round it for the most-packed of the two dtypes.
    sublane = max(_sublane_multiple(x_nchw.dtype), _sublane_multiple(out_dtype))

    Mf = -(-M // f)                                   # folded rows (ceil)
    if tile_rows is not None:
        tile = min(_round_up(int(tile_rows), sublane), _round_up(Mf, sublane))
    else:
        tile = _pick_tile(Mf, fC, fE, in_bytes, out_bytes, w_bytes, sublane)
    Mf_pad = _round_up(Mf, tile)
    M_pad = Mf_pad * f

    # Glue: NCHW -> NHWC -> flatten rows (single XLA transpose pass; see TODO above).
    x_flat = jnp.transpose(x_nchw, (0, 2, 3, 1)).reshape(M, C)
    if M_pad != M:
        # Fallback for ragged shapes only; aligned shapes take the no-copy path.
        x_flat = jnp.pad(x_flat, ((0, M_pad - M), (0, 0)))
    x_fold = x_flat.reshape(Mf_pad, fC)               # free row-major reshape

    w_ce = jnp.transpose(weight, (1, 0))              # [C, E]
    # Block-diagonal weight: f copies of W on the diagonal -> [f*C, f*E].
    w_bd = jnp.kron(jnp.eye(f, dtype=w_ce.dtype), w_ce)
    b_fold = jnp.tile(bias, (f,)).reshape(1, fE)      # [1, f*E]

    grid = (Mf_pad // tile,)

    # Scoped-VMEM request derived from actual usage (capped at 32 MiB: legal on
    # v5e/v6e 128 MiB and v7x 64 MiB physical VMEM alike).
    vmem_est = (2 * tile * fC * in_bytes + 2 * tile * fE * out_bytes
                + tile * fE * 4 + 2 * (fC * fE * w_bytes + fE * w_bytes))
    vmem_limit = int(min(32 << 20, max(16 << 20, vmem_est + vmem_est // 4 + (2 << 20))))

    out_fold = pl.pallas_call(
        _patch_embed_kernel,
        out_shape=jax.ShapeDtypeStruct((Mf_pad, fE), out_dtype),
        grid_spec=pltpu.PrefetchScalarGridSpec(
            num_scalar_prefetch=0,
            grid=grid,
            in_specs=[
                pl.BlockSpec((tile, fC), lambda i: (i, 0)),   # folded X rows
                pl.BlockSpec((fC, fE), lambda i: (0, 0)),     # resident weight
                pl.BlockSpec((1, fE), lambda i: (0, 0)),      # resident bias
            ],
            out_specs=pl.BlockSpec((tile, fE), lambda i: (i, 0)),
        ),
        compiler_params=pltpu.CompilerParams(
            dimension_semantics=("parallel",),
            vmem_limit_bytes=vmem_limit,
        ),
    )(x_fold, w_bd, b_fold)

    # Folded output bytes == NHWC layout bytes: unfold for free.
    if M_pad == M:
        out = out_fold.reshape(B, H, W, E)
    else:
        out = out_fold.reshape(M_pad, E)[:M].reshape(B, H, W, E)
    return out


if __name__ == "__main__":
    key = jax.random.PRNGKey(0)
    k_x, k_w, k_b = jax.random.split(key, 3)

    B, C, H, W = 2, 4, 16, 16   # small NCHW input
    E = 32                      # embed_dim (small)

    x = jax.random.normal(k_x, (B, C, H, W), dtype=jnp.float32)
    # Deterministic synthetic parameters (Conv2d(C, E, kernel_size=1)):
    weight = jax.random.normal(k_w, (E, C), dtype=jnp.float32) * 0.05
    bias = jax.random.normal(k_b, (E,), dtype=jnp.float32) * 0.01

    out = patch_embed_2d(x, weight, bias)
    out = jax.block_until_ready(out)

    # Reference: conv1x1 in NCHW then permute to NHWC.
    ref = jnp.einsum("bchw,ec->behw", x, weight) + bias[None, :, None, None]
    ref = jnp.transpose(ref, (0, 2, 3, 1))

    assert out.shape == (B, H, W, E), out.shape
    assert jnp.allclose(out, ref, atol=1e-5, rtol=1e-5)
    print("KERNEL_OK")
</pallas_src>

<mosaic_0001>
module attributes {stable_mosaic.version = 11 : i64} {
  func.func @_patch_embed_kernel(%arg0: i32, %arg1: memref<16x16xf32, #tpu.memory_space<vmem>>, %arg2: memref<16x128xf32, #tpu.memory_space<vmem>>, %arg3: memref<1x128xf32, #tpu.memory_space<vmem>>, %arg4: memref<16x128xf32, #tpu.memory_space<vmem>>) attributes {dimension_semantics = [#tpu.dimension_semantics<parallel>], iteration_bounds = array<i64: 8>, scalar_prefetch = 0 : i64, scratch_operands = 0 : i64, tpu.core_type = #tpu.core_type<tc>, window_params = [{transform_indices = @transform_0, window_bounds = array<i64: 16, 16>}, {pipeline_mode = #tpu.pipeline_mode<synchronous>, transform_indices = @transform_1, window_bounds = array<i64: 16, 128>}, {pipeline_mode = #tpu.pipeline_mode<synchronous>, transform_indices = @transform_2, window_bounds = array<i64: 1, 128>}, {transform_indices = @transform_3, window_bounds = array<i64: 16, 128>}]} {
    %c0 = arith.constant 0 : index
    %c0_0 = arith.constant 0 : index
    %0 = vector.load %arg1[%c0, %c0_0] : memref<16x16xf32, #tpu.memory_space<vmem>>, vector<16x16xf32>
    %c0_1 = arith.constant 0 : index
    %c0_2 = arith.constant 0 : index
    %1 = vector.load %arg2[%c0_1, %c0_2] : memref<16x128xf32, #tpu.memory_space<vmem>>, vector<16x128xf32>
    %cst = arith.constant dense<0.000000e+00> : vector<16x128xf32>
    %2 = tpu.matmul %0, %1, %cst {dimension_numbers = #tpu.dot_dimension_numbers<[1], [0], [0], [1], [0, 0, 1, 1], [], []>} : vector<16x16xf32>, vector<16x128xf32>, vector<16x128xf32> -> vector<16x128xf32>
    %c0_3 = arith.constant 0 : index
    %c0_4 = arith.constant 0 : index
    %3 = vector.load %arg3[%c0_3, %c0_4] : memref<1x128xf32, #tpu.memory_space<vmem>>, vector<1x128xf32>
    %4 = vector.broadcast %3 : vector<1x128xf32> to vector<16x128xf32>
    %5 = arith.addf %2, %4 : vector<16x128xf32>
    %c0_5 = arith.constant 0 : index
    %c0_6 = arith.constant 0 : index
    %6 = vector.load %arg4[%c0_5, %c0_6] : memref<16x128xf32, #tpu.memory_space<vmem>>, vector<16x128xf32>
    tpu.vector_store %arg4[%c0_5, %c0_6], %5 {strides = array<i32>} : memref<16x128xf32, #tpu.memory_space<vmem>>, vector<16x128xf32>,
    return
  }
  func.func @transform_0(%arg0: i32) -> (i32, i32) {
    %c0_i32 = arith.constant 0 : i32
    %c0_i32_0 = arith.constant 0 : i32
    return %arg0, %c0_i32 : i32, i32
  }
  func.func @transform_1(%arg0: i32) -> (i32, i32) {
    %c0_i32 = arith.constant 0 : i32
    %c0_i32_0 = arith.constant 0 : i32
    %c0_i32_1 = arith.constant 0 : i32
    return %c0_i32, %c0_i32_0 : i32, i32
  }
  func.func @transform_2(%arg0: i32) -> (i32, i32) {
    %c0_i32 = arith.constant 0 : i32
    %c0_i32_0 = arith.constant 0 : i32
    %c0_i32_1 = arith.constant 0 : i32
    return %c0_i32, %c0_i32_0 : i32, i32
  }
  func.func @transform_3(%arg0: i32) -> (i32, i32) {
    %c0_i32 = arith.constant 0 : i32
    %c0_i32_0 = arith.constant 0 : i32
    return %arg0, %c0_i32 : i32, i32
  }
}

</mosaic_0001>

<llo_original>
// kernel: tpu_custom_call.1
$region0: #{tpu_custom_call.1}
  #allocation0 [shape = 'u32[]', space=smem, size = 0x4, offset = 0x4, fixed_abs, tag = 'smem constant byte address 0x4 - core index']
  #allocation1 [shape = 'u32[72,128]{1,0:T(1,128)}', space=vmem, size = 0x9000, scoped, tag = 'internal scratch']
  %s0 = inlined_call_operand.vmem [shape: f32[128,16], index: 0, kind: input, shape index: {}]
  %s1 = inlined_call_operand.vmem [shape: f32[16,128], index: 1, kind: input, shape index: {}]
  %s2 = inlined_call_operand.vmem [shape: f32[1,128], index: 2, kind: input, shape index: {}]
  %s3 = inlined_call_operand.hbm [shape: f32[128,128], index: 3, kind: output, shape index: {}]
  %s4 = sld [smem:[#allocation0]]
  $region45: #{tpu_custom_call.1} parent=0
    _
  %s6 = ssub.s32 1, %s4
  %s7 = scalar_select 0, %s6, %s4
  $region1: #{tpu_custom_call.1} parent=0
    #allocation2 [shape = 'u8[16384]{0}', space=vmem, size = 0x4000, scoped, tag = 'output window, operand 0']
    #allocation3 [shape = 's32[2]{0}', space=sflag, size = 0x8, scoped, tag = 'scoped memory for tpu_custom_call.1']
    %8 = vsyncpa [#allocation3], 0
    %s9 = scalar_lea.sflag [#allocation3], 1
    %10 = vsyncpa %s9, 0
    loop: start=0, step=1, limit=10
    $region2: #{tpu_custom_call.1} parent=1 // loop_pre_header
      _
    $region3: #{tpu_custom_call.1} parent=1 // loop_header
      %s12 = sphi 0, %s16
      %p13 = scmp.ge.s32.totalorder %s12, 10
      %s22 = sphi 0, %s24
      %s25 = sphi 0, %s22
      %s26 = sphi 0, %s25
      %s42 = sphi 0, %s26
      %s46 = sphi 0, %s46
      %s48 = sphi 0, %s46
      %s49 = sphi 0, %s48
      %s63 = sphi 0, %s49
      %s67 = sphi 0, %s67
      %s69 = sphi 0, %s67
      %s70 = sphi 0, %s69
      %s84 = sphi 0, %s70
      %s90 = sphi 0, %s92
      %s93 = sphi 0, %s90
      %s94 = sphi 0, %s93
      %s110 = sphi 0, %s94
    $region4: #{tpu_custom_call.1} parent=1 // loop_header_branch
      %15 = sbr.rel (%p13) target = $region8
    $region5: #{tpu_custom_call.1} parent=1 // loop_body
      %s17 = ssub.s32 %s12, 1
      %s18 = ssub.s32 %s12, 2
      %s19 = sadd.s32 %s12, 1
      %s20 = ssub.s32 %s12, %s19
      %p21 = scmp.eq.s32.totalorder %s20, 0
      %s23 = sadd.s32 %s22, 1
      %s24 = scalar_select %p21, %s22, %s23
      %p27 = pneg %p21
      %p28 = scmp.eq.s32.totalorder %s12, 7
      %p29 = por %p27, %p28
      %p30 = scmp.ne.s32.totalorder %s22, %s25
      %p31 = scmp.eq.s32.totalorder %s12, 0
      %p32 = por %p30, %p31
      %p33 = scmp.ne.s32.totalorder %s22, %s25
      %p34 = scmp.eq.s32.totalorder %s17, 7
      %p35 = por %p33, %p34
      %p36 = scmp.ne.s32.totalorder %s25, %s26
      %p37 = scmp.eq.s32.totalorder %s17, 0
      %p38 = por %p36, %p37
      %p39 = scmp.ne.s32.totalorder %s25, %s26
      %p40 = scmp.eq.s32.totalorder %s18, 7
      %p41 = por %p39, %p40
      %p43 = scmp.ne.s32.totalorder %s26, %s42
      %p44 = scmp.eq.s32.totalorder %s18, 0
      %p45 = por %p43, %p44
      %s47 = sadd.s32 %s46, 1
      %p50 = scmp.eq.s32.totalorder %s12, 7
      %p51 = scmp.ne.s32.totalorder %s46, %s48
      %p52 = scmp.eq.s32.totalorder %s12, 0
      %p53 = por %p51, %p52
      %p54 = scmp.ne.s32.totalorder %s46, %s48
      %p55 = scmp.eq.s32.totalorder %s17, 7
      %p56 = por %p54, %p55
      %p57 = scmp.ne.s32.totalorder %s48, %s49
      %p58 = scmp.eq.s32.totalorder %s17, 0
      %p59 = por %p57, %p58
      %p60 = scmp.ne.s32.totalorder %s48, %s49
      %p61 = scmp.eq.s32.totalorder %s18, 7
      %p62 = por %p60, %p61
      %p64 = scmp.ne.s32.totalorder %s49, %s63
      %p65 = scmp.eq.s32.totalorder %s18, 0
      %p66 = por %p64, %p65
      %s68 = sadd.s32 %s67, 1
      %p71 = scmp.eq.s32.totalorder %s12, 7
      %p72 = scmp.ne.s32.totalorder %s67, %s69
      %p73 = scmp.eq.s32.totalorder %s12, 0
      %p74 = por %p72, %p73
      %p75 = scmp.ne.s32.totalorder %s67, %s69
      %p76 = scmp.eq.s32.totalorder %s17, 7
      %p77 = por %p75, %p76
      %p78 = scmp.ne.s32.totalorder %s69, %s70
      %p79 = scmp.eq.s32.totalorder %s17, 0
      %p80 = por %p78, %p79
      %p81 = scmp.ne.s32.totalorder %s69, %s70
      %p82 = scmp.eq.s32.totalorder %s18, 7
      %p83 = por %p81, %p82
      %p85 = scmp.ne.s32.totalorder %s70, %s84
      %p86 = scmp.eq.s32.totalorder %s18, 0
      %p87 = por %p85, %p86
      %s88 = ssub.s32 %s12, %s19
      %p89 = scmp.eq.s32.totalorder %s88, 0
      %s91 = sadd.s32 %s90, 1
      %s92 = scalar_select %p89, %s90, %s91
      %p95 = pneg %p89
      %p96 = scmp.eq.s32.totalorder %s12, 7
      %p97 = por %p95, %p96
      %p98 = scmp.ne.s32.totalorder %s90, %s93
      %p99 = scmp.eq.s32.totalorder %s12, 0
      %p100 = por %p98, %p99
      %p101 = scmp.ne.s32.totalorder %s90, %s93
      %p102 = scmp.eq.s32.totalorder %s17, 7
      %p103 = por %p101, %p102
      %p104 = scmp.ne.s32.totalorder %s93, %s94
      %p105 = scmp.eq.s32.totalorder %s17, 0
      %p106 = por %p104, %p105
      %p107 = scmp.ne.s32.totalorder %s93, %s94
      %p108 = scmp.eq.s32.totalorder %s18, 7
      %p109 = por %p107, %p108
      %p111 = scmp.ne.s32.totalorder %s94, %s110
      %p112 = scmp.eq.s32.totalorder %s18, 0
      %p113 = por %p111, %p112
      %p114 = scmp.le.s32.totalorder 1, %s12
      %p115 = scmp.lt.s32.totalorder %s12, 9
      %p116 = pnand %p114, %p115
      %p117 = pneg %p116
      // Predicated region
      $region9: #{tpu_custom_call.1} parent=5 // pred_check
        _
      $region10: #{tpu_custom_call.1} parent=5 // pred_check_branch
        %119 = sbr.rel (%p116) target = $region12
      $region11: #{tpu_custom_call.1} parent=5 // pred_region
        %s120 = ssub.s32 %s12, 1
        // Predicated region
        $region13: #{tpu_custom_call.1} parent=11 // pred_check
          %p121 = pneg %p59
        $region14: #{tpu_custom_call.1} parent=11 // pred_check_branch
          %123 = sbr.rel (%p121) target = $region16
        $region15: #{tpu_custom_call.1} parent=11 // pred_region
          _
        $region16: #{tpu_custom_call.1} parent=11 // pred_fallthru
          _
        // Predicated region
        $region17: #{tpu_custom_call.1} parent=11 // pred_check
          %p124 = pneg %p80
        $region18: #{tpu_custom_call.1} parent=11 // pred_check_branch
          %126 = sbr.rel (%p124) target = $region20
        $region19: #{tpu_custom_call.1} parent=11 // pred_region
          _
        $region20: #{tpu_custom_call.1} parent=11 // pred_fallthru
          _
      $region12: #{tpu_custom_call.1} parent=5 // pred_fallthru
        _
      %p127 = scmp.lt.s32.totalorder %s12, 8
      // Predicated region
      $region21: #{tpu_custom_call.1} parent=5 // pred_check
        %p128 = pneg %p127
      $region22: #{tpu_custom_call.1} parent=5 // pred_check_branch
        %130 = sbr.rel (%p128) target = $region24
      $region23: #{tpu_custom_call.1} parent=5 // pred_region
        // Predicated region
        $region25: #{tpu_custom_call.1} parent=23 // pred_check
          %p131 = pneg %p32
        $region26: #{tpu_custom_call.1} parent=23 // pred_check_branch
          %133 = sbr.rel (%p131) target = $region28
        $region27: #{tpu_custom_call.1} parent=23 // pred_region
          %s134 = smul.u32 2, %s12
          %p135 = scmp.lt.s32.totalorder %s134, 15
          %s136 = scalar_select %p135, %s134, 15
          %s137 = smul.addr %s136, 8
          %s138 = scalar_lea.vmem %s0, %s137
          %s139 = smul.u32 2, %s12
        $region28: #{tpu_custom_call.1} parent=23 // pred_fallthru
          _
      $region24: #{tpu_custom_call.1} parent=5 // pred_fallthru
        _
      %p140 = scmp.le.s32.totalorder 1, %s12
      %p141 = scmp.lt.s32.totalorder %s12, 9
      %p142 = pnand %p140, %p141
      %p143 = pneg %p142
      // Predicated region
      $region29: #{tpu_custom_call.1} parent=5 // pred_check
        _
      $region30: #{tpu_custom_call.1} parent=5 // pred_check_branch
        %145 = sbr.rel (%p142) target = $region32
      $region31: #{tpu_custom_call.1} parent=5 // pred_region
        %s146 = ssub.s32 %s12, 1
        %s147 = smul.u32 2, %s17
        %p148 = scmp.lt.s32.totalorder %s147, 15
        %s149 = scalar_select %p148, %s147, 15
        %s150 = smul.addr %s149, 8
        %s151 = scalar_lea.vmem %s0, %s150
        %p152 = pneg %p38
        %p153 = pneg %p35
        %p154 = pneg %p59
        %p155 = pneg %p56
        %p156 = pneg %p80
        %p157 = pneg %p77
        %p158 = pneg %p106
        %p159 = pneg %p103
        %s160 = sand.u32 %s93, 1
        %s161 = scalar_lea.sflag [#allocation3], %s160
        %s162 = sand.u32 %s93, 1
        %s163 = smul.addr %s162, 16
        %s164 = scalar_lea.vmem [#allocation2], %s163
        %s165 = smul.u32 2, %s17
        %p166 = scmp.lt.s32.totalorder %s165, 15
        %s167 = scalar_select %p166, %s165, 15
        %s168 = smul.addr %s167, 8
        %s169 = scalar_lea.vmem %s0, %s168
        %s170 = smul.u32 2, %s17
        %s171 = smul.u32 2, %s17
        %v172 = vld [vmem:[%s169] sm:$0xff]
        %v173 = vld [vmem:[%s169 + $0x8] sm:$0xff]
        %v174 = vld [vmem:[%s1] sm:$0xff]
        %v175 = vld [vmem:[%s1 + $0x8] sm:$0xff]
        %v176 = vld [vmem:[%s2] sm:$0x1]
        %v178 = vperm.slane %v176, 0
        %vm180 = vcmask 130048
        %v182 = vsel %vm180, %v172, 0
        %v185 = vsel %vm180, %v173, 0
        %187 = vmatpush.msra.mxu0 0.0
        %188 = vmatpush.msra.mxu0 0.0
        %189 = vmatpush.msra.mxu0 0.0
        %190 = vmatpush.msra.mxu0 0.0
        %191 = vmatpush.msra.mxu0 0.0
        %192 = vmatpush.msra.mxu0 0.0
        %193 = vmatpush.msra.mxu0 0.0
        %194 = vmatpush.msra.mxu0 0.0
        %195 = vmatpush.msra.mxu0 0.0
        %196 = vmatpush.msra.mxu0 0.0
        %197 = vmatpush.msra.mxu0 0.0
        %198 = vmatpush.msra.mxu0 0.0
        %199 = vmatpush.msra.mxu0 0.0
        %200 = vmatpush.msra.mxu0 0.0
        %201 = vmatpush.msra.mxu0 %v175
        %202 = vmatpush.msra.mxu0 %v174
        %203 = vmatmul.f32.gmra.mxu0 %v182
        %v204 = vpop.f32.mrf.mxu0
        %v205 = vadd.f32 %v178, %v204
        %206 = vmatmul.f32.gmra.mxu0 %v185
        %v207 = vpop.f32.mrf.mxu0
        %v208 = vadd.f32 %v178, %v207
        %209 = vdwg.mxu0
        %210 = vst [vmem:[%s164] sm:$0xff] %v205
        %211 = vst [vmem:[%s164 + $0x8] sm:$0xff] %v208
        %s212 = sand.u32 %s93, 1
        %s213 = scalar_lea.sflag [#allocation3], %s212
        %s214 = sand.u32 %s93, 1
        %s215 = smul.addr %s214, 16
        %s216 = scalar_lea.vmem [#allocation2], %s215
        // Predicated region
        $region33: #{tpu_custom_call.1} parent=31 // pred_check
          %p217 = pneg %p103
        $region34: #{tpu_custom_call.1} parent=31 // pred_check_branch
          %219 = sbr.rel (%p217) target = $region36
        $region35: #{tpu_custom_call.1} parent=31 // pred_region
          %s220 = smul.u32 2, %s17
          %222 = vsyncadd %s213, 0
          %s223 = smul.addr %s220, 8
          %s224 = scalar_lea.hbm %s3, %s223
          %s225 = sshll.u32 %s216, 4
          %s226 = int_to_ptr.vmem [resolvable:$true] %s225
          %s227 = sshll.u32 %s224, 4
          %s228 = int_to_ptr.hbm [resolvable:$true] %s227
          %233 = dma.vmem_to_hbm [thread:$0]  %s226, 256, %s228, %s213, 128, 128, 8
        $region36: #{tpu_custom_call.1} parent=31 // pred_fallthru
          _
      $region32: #{tpu_custom_call.1} parent=5 // pred_fallthru
        _
      %p234 = scmp.le.s32.totalorder 2, %s12
      // Predicated region
      $region37: #{tpu_custom_call.1} parent=5 // pred_check
        %p235 = pneg %p234
      $region38: #{tpu_custom_call.1} parent=5 // pred_check_branch
        %237 = sbr.rel (%p235) target = $region40
      $region39: #{tpu_custom_call.1} parent=5 // pred_region
        %s238 = ssub.s32 %s12, 2
        // Predicated region
        $region41: #{tpu_custom_call.1} parent=39 // pred_check
          %p239 = pneg %p109
        $region42: #{tpu_custom_call.1} parent=39 // pred_check_branch
          %241 = sbr.rel (%p239) target = $region44
        $region43: #{tpu_custom_call.1} parent=39 // pred_region
          %s242 = sand.u32 %s94, 1
          %s243 = scalar_lea.sflag [#allocation3], %s242
          %s244 = sand.u32 %s94, 1
          %s245 = smul.addr %s244, 16
          %s246 = scalar_lea.vmem [#allocation2], %s245
          %248 = dma.done %s243, 256
        $region44: #{tpu_custom_call.1} parent=39 // pred_fallthru
          _
      $region40: #{tpu_custom_call.1} parent=5 // pred_fallthru
        _
    $region6: #{tpu_custom_call.1} parent=1 // loop_footer
      %s16 = sadd.s32 1, %s12
    $region7: #{tpu_custom_call.1} parent=1 // loop_footer_branch
      %11 = sbr.rel target = $region3
    $region8: #{tpu_custom_call.1} parent=1 // loop_exit
      _
    %249 = vsyncpa [#allocation3], 1
    %s250 = scalar_lea.sflag [#allocation3], 1
    %251 = vsyncpa %s250, 1

</llo_original>
